<compile_context>
chip_gen: v7x
topology: tpu7x:2x2x1
jax: 0.10.0
libtpu: 0.0.40
codegen_flags: <defaults>
</compile_context>

<pallas_src>
import jax
import jax.numpy as jnp
from jax.experimental import pallas as pl
from jax.experimental.pallas import tpu as pltpu


def _round_up(a, b):
    return -(-a // b) * b


def _sigmoid_eup(y):
    # sigmoid(y) == 0.5*tanh(0.5*y) + 0.5 : single EUP transcendental,
    # no divide / second exp on the VALU.
    return 0.5 * jnp.tanh(0.5 * y) + 0.5


def _mm_bias_sigmoid_kernel(p_ref, w_ref, b_ref, o_ref):
    """Single-K-step M-tile of sigmoid(patches @ W + b).

    p_ref: (m_tile, K)      im2col patches (K = KH*KW*Cin)
    w_ref: (K, C)           weight (C = Cout, possibly lane-padded)
    b_ref: (1, C)           bias
    o_ref: (m_tile, C)      output tile
    """
    y = jnp.dot(p_ref[...], w_ref[...], preferred_element_type=jnp.float32)
    y = y + b_ref[...]
    o_ref[...] = _sigmoid_eup(y).astype(o_ref.dtype)


def _mm_bias_sigmoid_ktiled_kernel(p_ref, w_ref, b_ref, o_ref, acc_ref):
    """K-tiled variant: K is the last ('arbitrary') grid axis, f32 accumulator."""
    k = pl.program_id(1)

    @pl.when(k == 0)
    def _():
        acc_ref[...] = jnp.zeros_like(acc_ref)

    acc_ref[...] += jnp.dot(p_ref[...], w_ref[...],
                            preferred_element_type=jnp.float32)

    @pl.when(k == pl.num_programs(1) - 1)
    def _():
        y = acc_ref[...] + b_ref[...]
        o_ref[...] = _sigmoid_eup(y).astype(o_ref.dtype)


def conv2d_hidden_layer_np_forward(x_nchw, weight_oihw, bias,
                                   stride=1, padding=0):
    """Forward pass of Conv2dHiddenLayerNP: sigmoid(conv2d(x, W, b))."""
    N, Cin, H, W = x_nchw.shape
    Cout, Cin_w, KH, KW = weight_oihw.shape
    assert Cin_w == Cin, "groups != 1 not supported"

    if isinstance(stride, (tuple, list)):
        sh, sw = int(stride[0]), int(stride[1])
    else:
        sh = sw = int(stride)
    if isinstance(padding, (tuple, list)):
        ph, pw = int(padding[0]), int(padding[1])
    else:
        ph = pw = int(padding)

    OH = (H - KH + 2 * ph) // sh + 1
    OW = (W - KW + 2 * pw) // sw + 1

    # ---- wrapper-side layout glue: NCHW -> NHWC, zero pad, im2col ----------
    # TODO(synk): for large shapes, assemble the (m_tile, K) patch tile inside
    # the kernel with strided DMAs from an NHWC x_pad kept in HBM
    # (memory_space=pl.ANY) to avoid materializing the (M, K) patches array
    # (~2*M*K*4 bytes of extra HBM traffic); the wrapper-im2col path below is
    # kept for small problems where single-call simplicity wins.
    x_nhwc = jnp.transpose(x_nchw, (0, 2, 3, 1))
    x_pad = jnp.pad(x_nhwc, ((0, 0), (ph, ph), (pw, pw), (0, 0)))
    taps = []
    for i in range(KH):
        for j in range(KW):
            taps.append(x_pad[:, i:i + (OH - 1) * sh + 1:sh,
                              j:j + (OW - 1) * sw + 1:sw, :])
    Kdim = KH * KW * Cin
    M = N * OH * OW
    # Tap order (kh, kw, cin) matches the weight reshape below.
    patches = jnp.concatenate(taps, axis=-1).reshape(M, Kdim)

    # Weight OIHW -> (KH, KW, Cin, Cout) -> (K, Cout).
    w2d = jnp.transpose(weight_oihw, (2, 3, 1, 0)).reshape(Kdim, Cout)

    # ---- output-channel padding: lane-dense only when Cout is near 128 -----
    if Cout % 128 == 0:
        cpad = Cout                       # already lane-dense
    elif Cout >= 64:
        cpad = _round_up(Cout, 128)       # close to 128: pad for unmasked vst
    else:
        cpad = Cout                       # small Cout: masked vst, but no
                                          # 16x HBM-writeback amplification
    if cpad != Cout:
        w_p = jnp.pad(w2d, ((0, 0), (0, cpad - Cout)))
        b_p = jnp.pad(bias, (0, cpad - Cout)).reshape(1, cpad)
    else:
        w_p, b_p = w2d, bias.reshape(1, cpad)

    # ---- M tiling -----------------------------------------------------------
    if M <= 1024:
        m_tile = _round_up(M, 8)                          # single grid step
    elif M <= 2048:
        # >= 2 tiles so v7x's two TensorCores both get work + pipelining exists
        m_tile = _round_up(_round_up(M, 2) // 2, 512)
    else:
        m_tile = 1024                                     # amortize step cost

    # ---- K tiling (only when K would strain VMEM) ---------------------------
    if Kdim <= 1024:
        k_tile, k_pad = Kdim, Kdim
    else:
        k_tile = 512
        k_pad = _round_up(Kdim, k_tile)

    # ---- VMEM budget: fit v7x (64 MiB physical / 32 MiB scoped default) ----
    def _footprint(mt):
        f32 = 4
        return (3 * mt * k_tile * f32        # patch stream (<= 3 buffers)
                + 2 * k_tile * cpad * f32    # weight
                + 2 * mt * cpad * f32        # output tile
                + mt * cpad * f32)           # accumulator

    while _footprint(m_tile) > 40 * (1 << 20) and m_tile > 256:
        m_tile //= 2
    vmem_limit = int(min(max(1.5 * _footprint(m_tile), 16 * (1 << 20)),
                         60 * (1 << 20)))

    m_pad = _round_up(M, m_tile)
    if m_pad != M:
        patches = jnp.pad(patches, ((0, m_pad - M), (0, 0)))
    if k_pad != Kdim:
        patches = jnp.pad(patches, ((0, 0), (0, k_pad - Kdim)))
        w_p = jnp.pad(w_p, ((0, k_pad - Kdim), (0, 0)))

    m_steps = m_pad // m_tile
    k_steps = k_pad // k_tile

    # Streaming patches spec: 3-deep pipeline when there are steps to overlap.
    if k_steps == 1:
        p_idx = lambda i: (i, 0)
    else:
        p_idx = lambda i, k: (i, k)
    if m_steps * k_steps >= 3:
        p_spec = pl.BlockSpec((m_tile, k_tile), p_idx,
                              pipeline_mode=pl.Buffered(3))
    else:
        p_spec = pl.BlockSpec((m_tile, k_tile), p_idx)

    if k_steps == 1:
        grid_spec = pltpu.PrefetchScalarGridSpec(
            num_scalar_prefetch=0,
            grid=(m_steps,),
            in_specs=[p_spec,
                      pl.BlockSpec((k_tile, cpad), lambda i: (0, 0)),
                      pl.BlockSpec((1, cpad), lambda i: (0, 0))],
            out_specs=pl.BlockSpec((m_tile, cpad), lambda i: (i, 0)),
        )
        kernel = _mm_bias_sigmoid_kernel
        dim_sem = ("parallel",)
    else:
        grid_spec = pltpu.PrefetchScalarGridSpec(
            num_scalar_prefetch=0,
            grid=(m_steps, k_steps),
            in_specs=[p_spec,
                      pl.BlockSpec((k_tile, cpad), lambda i, k: (k, 0)),
                      pl.BlockSpec((1, cpad), lambda i, k: (0, 0))],
            out_specs=pl.BlockSpec((m_tile, cpad), lambda i, k: (i, 0)),
            scratch_shapes=[pltpu.VMEM((m_tile, cpad), jnp.float32)],
        )
        kernel = _mm_bias_sigmoid_ktiled_kernel
        dim_sem = ("parallel", "arbitrary")

    out_flat = pl.pallas_call(
        kernel,
        out_shape=jax.ShapeDtypeStruct((m_pad, cpad), x_nchw.dtype),
        grid_spec=grid_spec,
        compiler_params=pltpu.CompilerParams(
            dimension_semantics=dim_sem,
            vmem_limit_bytes=vmem_limit),
    )(patches, w_p, b_p)

    out = out_flat
    if m_pad != M or cpad != Cout:
        out = out[:M, :Cout]
    out = out.reshape(N, OH, OW, Cout)
    return jnp.transpose(out, (0, 3, 1, 2))


if __name__ == "__main__":
    # Small shapes consistent with the module: in_channels=4, out_channels=8,
    # in_size=16, kernel_size=3, stride=1, padding=1 -> out_size=16.
    N, Cin, H = 2, 4, 16
    Cout, Ksz = 8, 3
    stride, padding = 1, 1

    key = jax.random.PRNGKey(0)
    kx, kw, kb = jax.random.split(key, 3)
    x = jax.random.normal(kx, (N, Cin, H, H), dtype=jnp.float32)
    # Deterministic synthetic parameters (the module's weight/bias are plain
    # tensors of these shapes; no checkpoint is loaded).
    weight = 0.1 * jax.random.normal(kw, (Cout, Cin, Ksz, Ksz), dtype=jnp.float32)
    bias = 0.1 * jax.random.normal(kb, (Cout,), dtype=jnp.float32)

    out = conv2d_hidden_layer_np_forward(x, weight, bias,
                                         stride=stride, padding=padding)
    out = jax.block_until_ready(out)

    # Reference check against XLA conv + sigmoid.
    y_ref = jax.lax.conv_general_dilated(
        x, weight,
        window_strides=(stride, stride),
        padding=[(padding, padding), (padding, padding)],
        dimension_numbers=("NCHW", "OIHW", "NCHW"),
        precision=jax.lax.Precision.HIGHEST,
    ) + bias[None, :, None, None]
    e_ref = jax.nn.sigmoid(y_ref)

    assert out.shape == (N, Cout, H, H)
    max_err = float(jnp.max(jnp.abs(out - e_ref)))
    assert jnp.allclose(out, e_ref, atol=1e-5, rtol=1e-5), max_err
    print("KERNEL_OK")
</pallas_src>

<mosaic_0001>
module attributes {stable_mosaic.version = 11 : i64} {
  func.func @_mm_bias_sigmoid_kernel(%arg0: i32, %arg1: memref<512x36xf32, #tpu.memory_space<vmem>>, %arg2: memref<36x8xf32, #tpu.memory_space<vmem>>, %arg3: memref<1x8xf32, #tpu.memory_space<vmem>>, %arg4: memref<512x8xf32, #tpu.memory_space<vmem>>) attributes {dimension_semantics = [#tpu.dimension_semantics<parallel>], iteration_bounds = array<i64: 1>, scalar_prefetch = 0 : i64, scratch_operands = 0 : i64, tpu.core_type = #tpu.core_type<tc>, window_params = [{transform_indices = @transform_0, window_bounds = array<i64: 512, 36>}, {pipeline_mode = #tpu.pipeline_mode<synchronous>, transform_indices = @transform_1, window_bounds = array<i64: 36, 8>}, {pipeline_mode = #tpu.pipeline_mode<synchronous>, transform_indices = @transform_2, window_bounds = array<i64: 1, 8>}, {transform_indices = @transform_3, window_bounds = array<i64: 512, 8>}]} {
    %c0 = arith.constant 0 : index
    %c0_0 = arith.constant 0 : index
    %0 = vector.load %arg1[%c0, %c0_0] : memref<512x36xf32, #tpu.memory_space<vmem>>, vector<512x36xf32>
    %c0_1 = arith.constant 0 : index
    %c0_2 = arith.constant 0 : index
    %1 = vector.load %arg2[%c0_1, %c0_2] : memref<36x8xf32, #tpu.memory_space<vmem>>, vector<36x8xf32>
    %cst = arith.constant dense<0.000000e+00> : vector<512x8xf32>
    %2 = tpu.matmul %0, %1, %cst {dimension_numbers = #tpu.dot_dimension_numbers<[1], [0], [0], [1], [0, 0, 1, 1], [], []>} : vector<512x36xf32>, vector<36x8xf32>, vector<512x8xf32> -> vector<512x8xf32>
    %c0_3 = arith.constant 0 : index
    %c0_4 = arith.constant 0 : index
    %3 = vector.load %arg3[%c0_3, %c0_4] : memref<1x8xf32, #tpu.memory_space<vmem>>, vector<1x8xf32>
    %4 = vector.broadcast %3 : vector<1x8xf32> to vector<512x8xf32>
    %5 = arith.addf %2, %4 : vector<512x8xf32>
    %cst_5 = arith.constant 5.000000e-01 : f32
    %6 = vector.broadcast %cst_5 : f32 to vector<512x8xf32>
    %7 = arith.mulf %6, %5 : vector<512x8xf32>
    %8 = math.tanh %7 : vector<512x8xf32>
    %cst_6 = arith.constant 5.000000e-01 : f32
    %9 = vector.broadcast %cst_6 : f32 to vector<512x8xf32>
    %10 = arith.mulf %9, %8 : vector<512x8xf32>
    %cst_7 = arith.constant 5.000000e-01 : f32
    %11 = vector.broadcast %cst_7 : f32 to vector<512x8xf32>
    %12 = arith.addf %10, %11 : vector<512x8xf32>
    %c0_8 = arith.constant 0 : index
    %c0_9 = arith.constant 0 : index
    %13 = vector.load %arg4[%c0_8, %c0_9] : memref<512x8xf32, #tpu.memory_space<vmem>>, vector<512x8xf32>
    tpu.vector_store %arg4[%c0_8, %c0_9], %12 {strides = array<i32>} : memref<512x8xf32, #tpu.memory_space<vmem>>, vector<512x8xf32>,
    return
  }
  func.func @transform_0(%arg0: i32) -> (i32, i32) {
    %c0_i32 = arith.constant 0 : i32
    %c0_i32_0 = arith.constant 0 : i32
    return %arg0, %c0_i32 : i32, i32
  }
  func.func @transform_1(%arg0: i32) -> (i32, i32) {
    %c0_i32 = arith.constant 0 : i32
    %c0_i32_0 = arith.constant 0 : i32
    %c0_i32_1 = arith.constant 0 : i32
    return %c0_i32, %c0_i32_0 : i32, i32
  }
  func.func @transform_2(%arg0: i32) -> (i32, i32) {
    %c0_i32 = arith.constant 0 : i32
    %c0_i32_0 = arith.constant 0 : i32
    %c0_i32_1 = arith.constant 0 : i32
    return %c0_i32, %c0_i32_0 : i32, i32
  }
  func.func @transform_3(%arg0: i32) -> (i32, i32) {
    %c0_i32 = arith.constant 0 : i32
    %c0_i32_0 = arith.constant 0 : i32
    return %arg0, %c0_i32 : i32, i32
  }
}

</mosaic_0001>

<llo_original>
// kernel: tpu_custom_call.1
$region0: #{tpu_custom_call.1}
  #allocation0 [shape = 'u32[]', space=smem, size = 0x4, offset = 0x4, fixed_abs, tag = 'smem constant byte address 0x4 - core index']
  #allocation1 [shape = 'u32[144,128]{1,0:T(1,128)}', space=vmem, size = 0x12000, scoped, tag = 'internal scratch']
  %s0 = inlined_call_operand.vmem [shape: f32[512,36], index: 0, kind: input, shape index: {}]
  %s1 = inlined_call_operand.vmem [shape: f32[36,8], index: 1, kind: input, shape index: {}]
  %s2 = inlined_call_operand.vmem [shape: f32[1,8], index: 2, kind: input, shape index: {}]
  %s3 = inlined_call_operand.vmem [shape: f32[512,8], index: 3, kind: output, shape index: {}]
  %s4 = sld [smem:[#allocation0]]
  $region22: #{tpu_custom_call.1} parent=0
    _
  %s6 = ssub.s32 1, %s4
  %s7 = scalar_select 0, %s6, %s4
  // Predicated region
  $region2: #{tpu_custom_call.1} parent=0 // pred_check
    _
  $region3: #{tpu_custom_call.1} parent=0 // pred_check_branch
    %9 = sbr.rel (0) target = $region5
  $region4: #{tpu_custom_call.1} parent=0 // pred_region
    _
  $region5: #{tpu_custom_call.1} parent=0 // pred_fallthru
    _
  // Predicated region
  $region6: #{tpu_custom_call.1} parent=0 // pred_check
    _
  $region7: #{tpu_custom_call.1} parent=0 // pred_check_branch
    %11 = sbr.rel (0) target = $region9
  $region8: #{tpu_custom_call.1} parent=0 // pred_region
    _
  $region9: #{tpu_custom_call.1} parent=0 // pred_fallthru
    _
  // Predicated region
  $region10: #{tpu_custom_call.1} parent=0 // pred_check
    _
  $region11: #{tpu_custom_call.1} parent=0 // pred_check_branch
    %13 = sbr.rel (0) target = $region13
  $region12: #{tpu_custom_call.1} parent=0 // pred_region
    _
  $region13: #{tpu_custom_call.1} parent=0 // pred_fallthru
    _
  %v14 = vld [vmem:[%s0] sm:$0xff]
  %v15 = vld [vmem:[%s0 + $0x8] sm:$0xff]
  %v16 = vld [vmem:[%s0 + $0x10] sm:$0xff]
  %v17 = vld [vmem:[%s0 + $0x18] sm:$0xff]
  %v18 = vld [vmem:[%s0 + $0x20] sm:$0xff]
  %v19 = vld [vmem:[%s0 + $0x28] sm:$0xff]
  %v20 = vld [vmem:[%s0 + $0x30] sm:$0xff]
  %v21 = vld [vmem:[%s0 + $0x38] sm:$0xff]
  %v22 = vld [vmem:[%s0 + $0x40] sm:$0xff]
  %v23 = vld [vmem:[%s0 + $0x48] sm:$0xff]
  %v24 = vld [vmem:[%s0 + $0x50] sm:$0xff]
  %v25 = vld [vmem:[%s0 + $0x58] sm:$0xff]
  %v26 = vld [vmem:[%s0 + $0x60] sm:$0xff]
  %v27 = vld [vmem:[%s0 + $0x68] sm:$0xff]
  %v28 = vld [vmem:[%s0 + $0x70] sm:$0xff]
  %v29 = vld [vmem:[%s0 + $0x78] sm:$0xff]
  %v30 = vld [vmem:[%s0 + $0x80] sm:$0xff]
  %v31 = vld [vmem:[%s0 + $0x88] sm:$0xff]
  %v32 = vld [vmem:[%s0 + $0x90] sm:$0xff]
  %v33 = vld [vmem:[%s0 + $0x98] sm:$0xff]
  %v34 = vld [vmem:[%s0 + $0xa0] sm:$0xff]
  %v35 = vld [vmem:[%s0 + $0xa8] sm:$0xff]
  %v36 = vld [vmem:[%s0 + $0xb0] sm:$0xff]
  %v37 = vld [vmem:[%s0 + $0xb8] sm:$0xff]
  %v38 = vld [vmem:[%s0 + $0xc0] sm:$0xff]
  %v39 = vld [vmem:[%s0 + $0xc8] sm:$0xff]
  %v40 = vld [vmem:[%s0 + $0xd0] sm:$0xff]
  %v41 = vld [vmem:[%s0 + $0xd8] sm:$0xff]
  %v42 = vld [vmem:[%s0 + $0xe0] sm:$0xff]
  %v43 = vld [vmem:[%s0 + $0xe8] sm:$0xff]
  %v44 = vld [vmem:[%s0 + $0xf0] sm:$0xff]
  %v45 = vld [vmem:[%s0 + $0xf8] sm:$0xff]
  %v46 = vld [vmem:[%s0 + $0x100] sm:$0xff]
  %v47 = vld [vmem:[%s0 + $0x108] sm:$0xff]
  %v48 = vld [vmem:[%s0 + $0x110] sm:$0xff]
  %v49 = vld [vmem:[%s0 + $0x118] sm:$0xff]
  %v50 = vld [vmem:[%s0 + $0x120] sm:$0xff]
  %v51 = vld [vmem:[%s0 + $0x128] sm:$0xff]
  %v52 = vld [vmem:[%s0 + $0x130] sm:$0xff]
  %v53 = vld [vmem:[%s0 + $0x138] sm:$0xff]
  %v54 = vld [vmem:[%s0 + $0x140] sm:$0xff]
  %v55 = vld [vmem:[%s0 + $0x148] sm:$0xff]
  %v56 = vld [vmem:[%s0 + $0x150] sm:$0xff]
  %v57 = vld [vmem:[%s0 + $0x158] sm:$0xff]
  %v58 = vld [vmem:[%s0 + $0x160] sm:$0xff]
  %v59 = vld [vmem:[%s0 + $0x168] sm:$0xff]
  %v60 = vld [vmem:[%s0 + $0x170] sm:$0xff]
  %v61 = vld [vmem:[%s0 + $0x178] sm:$0xff]
  %v62 = vld [vmem:[%s0 + $0x180] sm:$0xff]
  %v63 = vld [vmem:[%s0 + $0x188] sm:$0xff]
  %v64 = vld [vmem:[%s0 + $0x190] sm:$0xff]
  %v65 = vld [vmem:[%s0 + $0x198] sm:$0xff]
  %v66 = vld [vmem:[%s0 + $0x1a0] sm:$0xff]
  %v67 = vld [vmem:[%s0 + $0x1a8] sm:$0xff]
  %v68 = vld [vmem:[%s0 + $0x1b0] sm:$0xff]
  %v69 = vld [vmem:[%s0 + $0x1b8] sm:$0xff]
  %v70 = vld [vmem:[%s0 + $0x1c0] sm:$0xff]
  %v71 = vld [vmem:[%s0 + $0x1c8] sm:$0xff]
  %v72 = vld [vmem:[%s0 + $0x1d0] sm:$0xff]
  %v73 = vld [vmem:[%s0 + $0x1d8] sm:$0xff]
  %v74 = vld [vmem:[%s0 + $0x1e0] sm:$0xff]
  %v75 = vld [vmem:[%s0 + $0x1e8] sm:$0xff]
  %v76 = vld [vmem:[%s0 + $0x1f0] sm:$0xff]
  %v77 = vld [vmem:[%s0 + $0x1f8] sm:$0xff]
  %v78 = vld [vmem:[%s1] sm:$0xff]
  %v79 = vld [vmem:[%s1 + $0x8] sm:$0xff]
  %v80 = vld [vmem:[%s1 + $0x10] sm:$0xff]
  %v81 = vld [vmem:[%s1 + $0x18] sm:$0xff]
  %v82 = vld [vmem:[%s1 + $0x20] sm:$0xf]
  %v83 = vld [vmem:[%s2] sm:$0x1]
  %v85 = vlaneseq
  %v86 = vshrl.u32 %v85, 7
  %v87 = vsub.s32 0, %v86
  %v88 = vrot.slane %v83, %v87
  %vm90 = vcmask 293888
  %v92 = vsel %vm90, %v14, 0
  %v95 = vsel %vm90, %v15, 0
  %v98 = vsel %vm90, %v16, 0
  %v101 = vsel %vm90, %v17, 0
  %v104 = vsel %vm90, %v18, 0
  %v107 = vsel %vm90, %v19, 0
  %v110 = vsel %vm90, %v20, 0
  %v113 = vsel %vm90, %v21, 0
  %v116 = vsel %vm90, %v22, 0
  %v119 = vsel %vm90, %v23, 0
  %v122 = vsel %vm90, %v24, 0
  %v125 = vsel %vm90, %v25, 0
  %v128 = vsel %vm90, %v26, 0
  %v131 = vsel %vm90, %v27, 0
  %v134 = vsel %vm90, %v28, 0
  %v137 = vsel %vm90, %v29, 0
  %v140 = vsel %vm90, %v30, 0
  %v143 = vsel %vm90, %v31, 0
  %v146 = vsel %vm90, %v32, 0
  %v149 = vsel %vm90, %v33, 0
  %v152 = vsel %vm90, %v34, 0
  %v155 = vsel %vm90, %v35, 0
  %v158 = vsel %vm90, %v36, 0
  %v161 = vsel %vm90, %v37, 0
  %v164 = vsel %vm90, %v38, 0
  %v167 = vsel %vm90, %v39, 0
  %v170 = vsel %vm90, %v40, 0
  %v173 = vsel %vm90, %v41, 0
  %v176 = vsel %vm90, %v42, 0
  %v179 = vsel %vm90, %v43, 0
  %v182 = vsel %vm90, %v44, 0
  %v185 = vsel %vm90, %v45, 0
  %v188 = vsel %vm90, %v46, 0
  %v191 = vsel %vm90, %v47, 0
  %v194 = vsel %vm90, %v48, 0
  %v197 = vsel %vm90, %v49, 0
  %v200 = vsel %vm90, %v50, 0
  %v203 = vsel %vm90, %v51, 0
  %v206 = vsel %vm90, %v52, 0
  %v209 = vsel %vm90, %v53, 0
  %v212 = vsel %vm90, %v54, 0
  %v215 = vsel %vm90, %v55, 0
  %v218 = vsel %vm90, %v56, 0
  %v221 = vsel %vm90, %v57, 0
  %v224 = vsel %vm90, %v58, 0
  %v227 = vsel %vm90, %v59, 0
  %v230 = vsel %vm90, %v60, 0
  %v233 = vsel %vm90, %v61, 0
  %v236 = vsel %vm90, %v62, 0
  %v239 = vsel %vm90, %v63, 0
  %v242 = vsel %vm90, %v64, 0
  %v245 = vsel %vm90, %v65, 0
  %v248 = vsel %vm90, %v66, 0
  %v251 = vsel %vm90, %v67, 0
  %v254 = vsel %vm90, %v68, 0
  %v257 = vsel %vm90, %v69, 0
  %v260 = vsel %vm90, %v70, 0
  %v263 = vsel %vm90, %v71, 0
  %v266 = vsel %vm90, %v72, 0
  %v269 = vsel %vm90, %v73, 0
  %v272 = vsel %vm90, %v74, 0
  %v275 = vsel %vm90, %v75, 0
  %v278 = vsel %vm90, %v76, 0
  %v281 = vsel %vm90, %v77, 0
  %vm283 = vcmask 1043456
  %v285 = vsel %vm283, %v82, 0
  %287 = vmatprep.subr.mxu0 0.0
  %288 = vmatpush1.msra.mxu0 %v78
  %289 = vmatprep.subr.mxu0 0.0
  %290 = vmatpush1.msra.mxu0 %v79
  %291 = vmatprep.subr.mxu0 0.0
  %292 = vmatpush1.msra.mxu0 %v80
  %293 = vmatprep.subr.mxu0 0.0
  %294 = vmatpush1.msra.mxu0 %v81
  %295 = vmatprep.subr.mxu0 0.0
  %296 = vmatpush1.msra.mxu0 %v285
  %297 = vmatprep.subr.mxu0 0.0
  %298 = vmatpush1.msra.mxu0 0.0
  %299 = vmatprep.subr.mxu0 0.0
  %300 = vmatpush1.msra.mxu0 0.0
  %301 = vmatprep.subr.mxu0 0.0
  %302 = vmatpush1.msra.mxu0 0.0
  %303 = vmatprep.subr.mxu0 0.0
  %304 = vmatpush1.msra.mxu0 0.0
  %305 = vmatprep.subr.mxu0 0.0
  %306 = vmatpush1.msra.mxu0 0.0
  %307 = vmatprep.subr.mxu0 0.0
  %308 = vmatpush1.msra.mxu0 0.0
  %309 = vmatprep.subr.mxu0 0.0
  %310 = vmatpush1.msra.mxu0 0.0
  %311 = vmatprep.subr.mxu0 0.0
  %312 = vmatpush1.msra.mxu0 0.0
  %313 = vmatprep.subr.mxu0 0.0
  %314 = vmatpush1.msra.mxu0 0.0
  %315 = vmatprep.subr.mxu0 0.0
  %316 = vmatpush1.msra.mxu0 0.0
  %317 = vmatprep.subr.mxu0 0.0
  %318 = vmatpush1.msra.mxu0 0.0
  %319 = vmatprep.subr.mxu0 0.0
  %320 = vmatpush1.msra.mxu0 0.0
  %321 = vmatprep.subr.mxu0 0.0
  %322 = vmatpush1.msra.mxu0 0.0
  %323 = vmatprep.subr.mxu0 0.0
  %324 = vmatpush1.msra.mxu0 0.0
  %325 = vmatprep.subr.mxu0 0.0
  %326 = vmatpush1.msra.mxu0 0.0
  %327 = vmatprep.subr.mxu0 0.0
  %328 = vmatpush1.msra.mxu0 0.0
  %329 = vmatprep.subr.mxu0 0.0
  %330 = vmatpush1.msra.mxu0 0.0
  %331 = vmatprep.subr.mxu0 0.0
  %332 = vmatpush1.msra.mxu0 0.0
  %333 = vmatprep.subr.mxu0 0.0
  %334 = vmatpush1.msra.mxu0 0.0
  %335 = vmatprep.subr.mxu0 0.0
  %336 = vmatpush1.msra.mxu0 0.0
  %337 = vmatprep.subr.mxu0 0.0
  %338 = vmatpush1.msra.mxu0 0.0
  %339 = vmatprep.subr.mxu0 0.0
  %340 = vmatpush1.msra.mxu0 0.0
  %341 = vmatprep.subr.mxu0 0.0
  %342 = vmatpush1.msra.mxu0 0.0
  %343 = vmatprep.subr.mxu0 0.0
  %344 = vmatpush1.msra.mxu0 0.0
  %345 = vmatprep.subr.mxu0 0.0
  %346 = vmatpush1.msra.mxu0 0.0
  %347 = vmatprep.subr.mxu0 0.0
  %348 = vmatpush1.msra.mxu0 0.0
  %349 = vmatprep.subr.mxu0 0.0
  %350 = vmatpush1.msra.mxu0 0.0
  %351 = vmatprep.mubr.f32.mxu0 0.0
  %352 = vmatmul.mubr.f32.gmra.mrb[0].mxu0 %v92
  %v353 = vpop.f32.mrb[0].mxu0
  %v354 = vadd.f32 %v88, %v353
  %v355 = vpop.f32.mrb[0].mxu0
  %356 = vmatprep.mubr.f32.mxu0 0.0
  %357 = vmatmul.mubr.f32.gmra.mrb[0].mxu0 %v95
  %v358 = vpop.f32.mrb[0].mxu0
  %v359 = vadd.f32 %v88, %v358
  %v360 = vpop.f32.mrb[0].mxu0
  %361 = vmatprep.mubr.f32.mxu0 0.0
  %362 = vmatmul.mubr.f32.gmra.mrb[0].mxu0 %v98
  %v363 = vpop.f32.mrb[0].mxu0
  %v364 = vadd.f32 %v88, %v363
  %v365 = vpop.f32.mrb[0].mxu0
  %366 = vmatprep.mubr.f32.mxu0 0.0
  %367 = vmatmul.mubr.f32.gmra.mrb[0].mxu0 %v101
  %v368 = vpop.f32.mrb[0].mxu0
  %v369 = vadd.f32 %v88, %v368
  %v370 = vpop.f32.mrb[0].mxu0
  %371 = vmatprep.mubr.f32.mxu0 0.0
  %372 = vmatmul.mubr.f32.gmra.mrb[0].mxu0 %v104
  %v373 = vpop.f32.mrb[0].mxu0
  %v374 = vadd.f32 %v88, %v373
  %v375 = vpop.f32.mrb[0].mxu0
  %376 = vmatprep.mubr.f32.mxu0 0.0
  %377 = vmatmul.mubr.f32.gmra.mrb[0].mxu0 %v107
  %v378 = vpop.f32.mrb[0].mxu0
  %v379 = vadd.f32 %v88, %v378
  %v380 = vpop.f32.mrb[0].mxu0
  %381 = vmatprep.mubr.f32.mxu0 0.0
  %382 = vmatmul.mubr.f32.gmra.mrb[0].mxu0 %v110
  %v383 = vpop.f32.mrb[0].mxu0
  %v384 = vadd.f32 %v88, %v383
  %v385 = vpop.f32.mrb[0].mxu0
  %386 = vmatprep.mubr.f32.mxu0 0.0
  %387 = vmatmul.mubr.f32.gmra.mrb[0].mxu0 %v113
  %v388 = vpop.f32.mrb[0].mxu0
  %v389 = vadd.f32 %v88, %v388
  %v390 = vpop.f32.mrb[0].mxu0
  %391 = vmatprep.mubr.f32.mxu0 0.0
  %392 = vmatmul.mubr.f32.gmra.mrb[0].mxu0 %v116
  %v393 = vpop.f32.mrb[0].mxu0
  %v394 = vadd.f32 %v88, %v393
  %v395 = vpop.f32.mrb[0].mxu0
  %396 = vmatprep.mubr.f32.mxu0 0.0
  %397 = vmatmul.mubr.f32.gmra.mrb[0].mxu0 %v119
  %v398 = vpop.f32.mrb[0].mxu0
  %v399 = vadd.f32 %v88, %v398
  %v400 = vpop.f32.mrb[0].mxu0
  %401 = vmatprep.mubr.f32.mxu0 0.0
  %402 = vmatmul.mubr.f32.gmra.mrb[0].mxu0 %v122
  %v403 = vpop.f32.mrb[0].mxu0
  %v404 = vadd.f32 %v88, %v403
  %v405 = vpop.f32.mrb[0].mxu0
  %406 = vmatprep.mubr.f32.mxu0 0.0
  %407 = vmatmul.mubr.f32.gmra.mrb[0].mxu0 %v125
  %v408 = vpop.f32.mrb[0].mxu0
  %v409 = vadd.f32 %v88, %v408
  %v410 = vpop.f32.mrb[0].mxu0
  %411 = vmatprep.mubr.f32.mxu0 0.0
  %412 = vmatmul.mubr.f32.gmra.mrb[0].mxu0 %v128
  %v413 = vpop.f32.mrb[0].mxu0
  %v414 = vadd.f32 %v88, %v413
  %v415 = vpop.f32.mrb[0].mxu0
  %416 = vmatprep.mubr.f32.mxu0 0.0
  %417 = vmatmul.mubr.f32.gmra.mrb[0].mxu0 %v131
  %v418 = vpop.f32.mrb[0].mxu0
  %v419 = vadd.f32 %v88, %v418
  %v420 = vpop.f32.mrb[0].mxu0
  %421 = vmatprep.mubr.f32.mxu0 0.0
  %422 = vmatmul.mubr.f32.gmra.mrb[0].mxu0 %v134
  %v423 = vpop.f32.mrb[0].mxu0
  %v424 = vadd.f32 %v88, %v423
  %v425 = vpop.f32.mrb[0].mxu0
  %426 = vmatprep.mubr.f32.mxu0 0.0
  %427 = vmatmul.mubr.f32.gmra.mrb[0].mxu0 %v137
  %v428 = vpop.f32.mrb[0].mxu0
  %v429 = vadd.f32 %v88, %v428
  %v430 = vpop.f32.mrb[0].mxu0
  %431 = vmatprep.mubr.f32.mxu0 0.0
  %432 = vmatmul.mubr.f32.gmra.mrb[0].mxu0 %v140
  %v433 = vpop.f32.mrb[0].mxu0
  %v434 = vadd.f32 %v88, %v433
  %v435 = vpop.f32.mrb[0].mxu0
  %436 = vmatprep.mubr.f32.mxu0 0.0
  %437 = vmatmul.mubr.f32.gmra.mrb[0].mxu0 %v143
  %v438 = vpop.f32.mrb[0].mxu0
  %v439 = vadd.f32 %v88, %v438
  %v440 = vpop.f32.mrb[0].mxu0
  %441 = vmatprep.mubr.f32.mxu0 0.0
  %442 = vmatmul.mubr.f32.gmra.mrb[0].mxu0 %v146
  %v443 = vpop.f32.mrb[0].mxu0
  %v444 = vadd.f32 %v88, %v443
  %v445 = vpop.f32.mrb[0].mxu0
  %446 = vmatprep.mubr.f32.mxu0 0.0
  %447 = vmatmul.mubr.f32.gmra.mrb[0].mxu0 %v149
  %v448 = vpop.f32.mrb[0].mxu0
  %v449 = vadd.f32 %v88, %v448
  %v450 = vpop.f32.mrb[0].mxu0
  %451 = vmatprep.mubr.f32.mxu0 0.0
  %452 = vmatmul.mubr.f32.gmra.mrb[0].mxu0 %v152
  %v453 = vpop.f32.mrb[0].mxu0
  %v454 = vadd.f32 %v88, %v453
  %v455 = vpop.f32.mrb[0].mxu0
  %456 = vmatprep.mubr.f32.mxu0 0.0
  %457 = vmatmul.mubr.f32.gmra.mrb[0].mxu0 %v155
  %v458 = vpop.f32.mrb[0].mxu0
  %v459 = vadd.f32 %v88, %v458
  %v460 = vpop.f32.mrb[0].mxu0
  %461 = vmatprep.mubr.f32.mxu0 0.0
  %462 = vmatmul.mubr.f32.gmra.mrb[0].mxu0 %v158
  %v463 = vpop.f32.mrb[0].mxu0
  %v464 = vadd.f32 %v88, %v463
  %v465 = vpop.f32.mrb[0].mxu0
  %466 = vmatprep.mubr.f32.mxu0 0.0
  %467 = vmatmul.mubr.f32.gmra.mrb[0].mxu0 %v161
  %v468 = vpop.f32.mrb[0].mxu0
  %v469 = vadd.f32 %v88, %v468
  %v470 = vpop.f32.mrb[0].mxu0
  %471 = vmatprep.mubr.f32.mxu0 0.0
  %472 = vmatmul.mubr.f32.gmra.mrb[0].mxu0 %v164
  %v473 = vpop.f32.mrb[0].mxu0
  %v474 = vadd.f32 %v88, %v473
  %v475 = vpop.f32.mrb[0].mxu0
  %476 = vmatprep.mubr.f32.mxu0 0.0
  %477 = vmatmul.mubr.f32.gmra.mrb[0].mxu0 %v167
  %v478 = vpop.f32.mrb[0].mxu0
  %v479 = vadd.f32 %v88, %v478
  %v480 = vpop.f32.mrb[0].mxu0
  %481 = vmatprep.mubr.f32.mxu0 0.0
  %482 = vmatmul.mubr.f32.gmra.mrb[0].mxu0 %v170
  %v483 = vpop.f32.mrb[0].mxu0
  %v484 = vadd.f32 %v88, %v483
  %v485 = vpop.f32.mrb[0].mxu0
  %486 = vmatprep.mubr.f32.mxu0 0.0
  %487 = vmatmul.mubr.f32.gmra.mrb[0].mxu0 %v173
  %v488 = vpop.f32.mrb[0].mxu0
  %v489 = vadd.f32 %v88, %v488
  %v490 = vpop.f32.mrb[0].mxu0
  %491 = vmatprep.mubr.f32.mxu0 0.0
  %492 = vmatmul.mubr.f32.gmra.mrb[0].mxu0 %v176
  %v493 = vpop.f32.mrb[0].mxu0
  %v494 = vadd.f32 %v88, %v493
  %v495 = vpop.f32.mrb[0].mxu0
  %496 = vmatprep.mubr.f32.mxu0 0.0
  %497 = vmatmul.mubr.f32.gmra.mrb[0].mxu0 %v179
  %v498 = vpop.f32.mrb[0].mxu0
  %v499 = vadd.f32 %v88, %v498
  %v500 = vpop.f32.mrb[0].mxu0
  %501 = vmatprep.mubr.f32.mxu0 0.0
  %502 = vmatmul.mubr.f32.gmra.mrb[0].mxu0 %v182
  %v503 = vpop.f32.mrb[0].mxu0
  %v504 = vadd.f32 %v88, %v503
  %v505 = vpop.f32.mrb[0].mxu0
  %506 = vmatprep.mubr.f32.mxu0 0.0
  %507 = vmatmul.mubr.f32.gmra.mrb[0].mxu0 %v185
  %v508 = vpop.f32.mrb[0].mxu0
  %v509 = vadd.f32 %v88, %v508
  %v510 = vpop.f32.mrb[0].mxu0
  %511 = vmatprep.mubr.f32.mxu0 0.0
  %512 = vmatmul.mubr.f32.gmra.mrb[0].mxu0 %v188
  %v513 = vpop.f32.mrb[0].mxu0
  %v514 = vadd.f32 %v88, %v513
  %v515 = vpop.f32.mrb[0].mxu0
  %516 = vmatprep.mubr.f32.mxu0 0.0
  %517 = vmatmul.mubr.f32.gmra.mrb[0].mxu0 %v191
  %v518 = vpop.f32.mrb[0].mxu0
  %v519 = vadd.f32 %v88, %v518
  %v520 = vpop.f32.mrb[0].mxu0
  %521 = vmatprep.mubr.f32.mxu0 0.0
  %522 = vmatmul.mubr.f32.gmra.mrb[0].mxu0 %v194
  %v523 = vpop.f32.mrb[0].mxu0
  %v524 = vadd.f32 %v88, %v523
  %v525 = vpop.f32.mrb[0].mxu0
  %526 = vmatprep.mubr.f32.mxu0 0.0
  %527 = vmatmul.mubr.f32.gmra.mrb[0].mxu0 %v197
  %v528 = vpop.f32.mrb[0].mxu0
  %v529 = vadd.f32 %v88, %v528
  %v530 = vpop.f32.mrb[0].mxu0
  %531 = vmatprep.mubr.f32.mxu0 0.0
  %532 = vmatmul.mubr.f32.gmra.mrb[0].mxu0 %v200
  %v533 = vpop.f32.mrb[0].mxu0
  %v534 = vadd.f32 %v88, %v533
  %v535 = vpop.f32.mrb[0].mxu0
  %536 = vmatprep.mubr.f32.mxu0 0.0
  %537 = vmatmul.mubr.f32.gmra.mrb[0].mxu0 %v203
  %v538 = vpop.f32.mrb[0].mxu0
  %v539 = vadd.f32 %v88, %v538
  %v540 = vpop.f32.mrb[0].mxu0
  %541 = vmatprep.mubr.f32.mxu0 0.0
  %542 = vmatmul.mubr.f32.gmra.mrb[0].mxu0 %v206
  %v543 = vpop.f32.mrb[0].mxu0
  %v544 = vadd.f32 %v88, %v543
  %v545 = vpop.f32.mrb[0].mxu0
  %546 = vmatprep.mubr.f32.mxu0 0.0
  %547 = vmatmul.mubr.f32.gmra.mrb[0].mxu0 %v209
  %v548 = vpop.f32.mrb[0].mxu0
  %v549 = vadd.f32 %v88, %v548
  %v550 = vpop.f32.mrb[0].mxu0
  %551 = vmatprep.mubr.f32.mxu0 0.0
  %552 = vmatmul.mubr.f32.gmra.mrb[0].mxu0 %v212
  %v553 = vpop.f32.mrb[0].mxu0
  %v554 = vadd.f32 %v88, %v553
  %v555 = vpop.f32.mrb[0].mxu0
  %556 = vmatprep.mubr.f32.mxu0 0.0
  %557 = vmatmul.mubr.f32.gmra.mrb[0].mxu0 %v215
  %v558 = vpop.f32.mrb[0].mxu0
  %v559 = vadd.f32 %v88, %v558
  %v560 = vpop.f32.mrb[0].mxu0
  %561 = vmatprep.mubr.f32.mxu0 0.0
  %562 = vmatmul.mubr.f32.gmra.mrb[0].mxu0 %v218
  %v563 = vpop.f32.mrb[0].mxu0
  %v564 = vadd.f32 %v88, %v563
  %v565 = vpop.f32.mrb[0].mxu0
  %566 = vmatprep.mubr.f32.mxu0 0.0
  %567 = vmatmul.mubr.f32.gmra.mrb[0].mxu0 %v221
  %v568 = vpop.f32.mrb[0].mxu0
  %v569 = vadd.f32 %v88, %v568
  %v570 = vpop.f32.mrb[0].mxu0
  %571 = vmatprep.mubr.f32.mxu0 0.0
  %572 = vmatmul.mubr.f32.gmra.mrb[0].mxu0 %v224
  %v573 = vpop.f32.mrb[0].mxu0
  %v574 = vadd.f32 %v88, %v573
  %v575 = vpop.f32.mrb[0].mxu0
  %576 = vmatprep.mubr.f32.mxu0 0.0
  %577 = vmatmul.mubr.f32.gmra.mrb[0].mxu0 %v227
  %v578 = vpop.f32.mrb[0].mxu0
  %v579 = vadd.f32 %v88, %v578
  %v580 = vpop.f32.mrb[0].mxu0
  %581 = vmatprep.mubr.f32.mxu0 0.0
  %582 = vmatmul.mubr.f32.gmra.mrb[0].mxu0 %v230
  %v583 = vpop.f32.mrb[0].mxu0
  %v584 = vadd.f32 %v88, %v583
  %v585 = vpop.f32.mrb[0].mxu0
  %586 = vmatprep.mubr.f32.mxu0 0.0
  %587 = vmatmul.mubr.f32.gmra.mrb[0].mxu0 %v233
  %v588 = vpop.f32.mrb[0].mxu0
  %v589 = vadd.f32 %v88, %v588
  %v590 = vpop.f32.mrb[0].mxu0
  %591 = vmatprep.mubr.f32.mxu0 0.0
  %592 = vmatmul.mubr.f32.gmra.mrb[0].mxu0 %v236
  %v593 = vpop.f32.mrb[0].mxu0
  %v594 = vadd.f32 %v88, %v593
  %v595 = vpop.f32.mrb[0].mxu0
  %596 = vmatprep.mubr.f32.mxu0 0.0
  %597 = vmatmul.mubr.f32.gmra.mrb[0].mxu0 %v239
  %v598 = vpop.f32.mrb[0].mxu0
  %v599 = vadd.f32 %v88, %v598
  %v600 = vpop.f32.mrb[0].mxu0
  %601 = vmatprep.mubr.f32.mxu0 0.0
  %602 = vmatmul.mubr.f32.gmra.mrb[0].mxu0 %v242
  %v603 = vpop.f32.mrb[0].mxu0
  %v604 = vadd.f32 %v88, %v603
  %v605 = vpop.f32.mrb[0].mxu0
  %606 = vmatprep.mubr.f32.mxu0 0.0
  %607 = vmatmul.mubr.f32.gmra.mrb[0].mxu0 %v245
  %v608 = vpop.f32.mrb[0].mxu0
  %v609 = vadd.f32 %v88, %v608
  %v610 = vpop.f32.mrb[0].mxu0
  %611 = vmatprep.mubr.f32.mxu0 0.0
  %612 = vmatmul.mubr.f32.gmra.mrb[0].mxu0 %v248
  %v613 = vpop.f32.mrb[0].mxu0
  %v614 = vadd.f32 %v88, %v613
  %v615 = vpop.f32.mrb[0].mxu0
  %616 = vmatprep.mubr.f32.mxu0 0.0
  %617 = vmatmul.mubr.f32.gmra.mrb[0].mxu0 %v251
  %v618 = vpop.f32.mrb[0].mxu0
  %v619 = vadd.f32 %v88, %v618
  %v620 = vpop.f32.mrb[0].mxu0
  %621 = vmatprep.mubr.f32.mxu0 0.0
  %622 = vmatmul.mubr.f32.gmra.mrb[0].mxu0 %v254
  %v623 = vpop.f32.mrb[0].mxu0
  %v624 = vadd.f32 %v88, %v623
  %v625 = vpop.f32.mrb[0].mxu0
  %626 = vmatprep.mubr.f32.mxu0 0.0
  %627 = vmatmul.mubr.f32.gmra.mrb[0].mxu0 %v257
  %v628 = vpop.f32.mrb[0].mxu0
  %v629 = vadd.f32 %v88, %v628
  %v630 = vpop.f32.mrb[0].mxu0
  %631 = vmatprep.mubr.f32.mxu0 0.0
  %632 = vmatmul.mubr.f32.gmra.mrb[0].mxu0 %v260
  %v633 = vpop.f32.mrb[0].mxu0
  %v634 = vadd.f32 %v88, %v633
  %v635 = vpop.f32.mrb[0].mxu0
  %636 = vmatprep.mubr.f32.mxu0 0.0
  %637 = vmatmul.mubr.f32.gmra.mrb[0].mxu0 %v263
  %v638 = vpop.f32.mrb[0].mxu0
  %v639 = vadd.f32 %v88, %v638
  %v640 = vpop.f32.mrb[0].mxu0
  %641 = vmatprep.mubr.f32.mxu0 0.0
  %642 = vmatmul.mubr.f32.gmra.mrb[0].mxu0 %v266
  %v643 = vpop.f32.mrb[0].mxu0
  %v644 = vadd.f32 %v88, %v643
  %v645 = vpop.f32.mrb[0].mxu0
  %646 = vmatprep.mubr.f32.mxu0 0.0
  %647 = vmatmul.mubr.f32.gmra.mrb[0].mxu0 %v269
  %v648 = vpop.f32.mrb[0].mxu0
  %v649 = vadd.f32 %v88, %v648
  %v650 = vpop.f32.mrb[0].mxu0
  %651 = vmatprep.mubr.f32.mxu0 0.0
  %652 = vmatmul.mubr.f32.gmra.mrb[0].mxu0 %v272
  %v653 = vpop.f32.mrb[0].mxu0
  %v654 = vadd.f32 %v88, %v653
  %v655 = vpop.f32.mrb[0].mxu0
  %656 = vmatprep.mubr.f32.mxu0 0.0
  %657 = vmatmul.mubr.f32.gmra.mrb[0].mxu0 %v275
  %v658 = vpop.f32.mrb[0].mxu0
  %v659 = vadd.f32 %v88, %v658
  %v660 = vpop.f32.mrb[0].mxu0
  %661 = vmatprep.mubr.f32.mxu0 0.0
  %662 = vmatmul.mubr.f32.gmra.mrb[0].mxu0 %v278
  %v663 = vpop.f32.mrb[0].mxu0
  %v664 = vadd.f32 %v88, %v663
  %v665 = vpop.f32.mrb[0].mxu0
  %666 = vmatprep.mubr.f32.mxu0 0.0
  %667 = vmatmul.mubr.f32.gmra.mrb[0].mxu0 %v281
  %v668 = vpop.f32.mrb[0].mxu0
  %v669 = vadd.f32 %v88, %v668
  %v670 = vpop.f32.mrb[0].mxu0
  %671 = vdwg.mxu0
  %v672 = vmul.f32 %v354, 0.5
  %v673 = vmul.f32 %v359, 0.5
  %v674 = vmul.f32 %v364, 0.5
  %v675 = vmul.f32 %v369, 0.5
  %v676 = vmul.f32 %v374, 0.5
  %v677 = vmul.f32 %v379, 0.5
  %v678 = vmul.f32 %v384, 0.5
  %v679 = vmul.f32 %v389, 0.5
  %v680 = vmul.f32 %v394, 0.5
  %v681 = vmul.f32 %v399, 0.5
  %v682 = vmul.f32 %v404, 0.5
  %v683 = vmul.f32 %v409, 0.5
  %v684 = vmul.f32 %v414, 0.5
  %v685 = vmul.f32 %v419, 0.5
  %v686 = vmul.f32 %v424, 0.5
  %v687 = vmul.f32 %v429, 0.5
  %v688 = vmul.f32 %v434, 0.5
  %v689 = vmul.f32 %v439, 0.5
  %v690 = vmul.f32 %v444, 0.5
  %v691 = vmul.f32 %v449, 0.5
  %v692 = vmul.f32 %v454, 0.5
  %v693 = vmul.f32 %v459, 0.5
  %v694 = vmul.f32 %v464, 0.5
  %v695 = vmul.f32 %v469, 0.5
  %v696 = vmul.f32 %v474, 0.5
  %v697 = vmul.f32 %v479, 0.5
  %v698 = vmul.f32 %v484, 0.5
  %v699 = vmul.f32 %v489, 0.5
  %v700 = vmul.f32 %v494, 0.5
  %v701 = vmul.f32 %v499, 0.5
  %v702 = vmul.f32 %v504, 0.5
  %v703 = vmul.f32 %v509, 0.5
  %v704 = vmul.f32 %v514, 0.5
  %v705 = vmul.f32 %v519, 0.5
  %v706 = vmul.f32 %v524, 0.5
  %v707 = vmul.f32 %v529, 0.5
  %v708 = vmul.f32 %v534, 0.5
  %v709 = vmul.f32 %v539, 0.5
  %v710 = vmul.f32 %v544, 0.5
  %v711 = vmul.f32 %v549, 0.5
  %v712 = vmul.f32 %v554, 0.5
  %v713 = vmul.f32 %v559, 0.5
  %v714 = vmul.f32 %v564, 0.5
  %v715 = vmul.f32 %v569, 0.5
  %v716 = vmul.f32 %v574, 0.5
  %v717 = vmul.f32 %v579, 0.5
  %v718 = vmul.f32 %v584, 0.5
  %v719 = vmul.f32 %v589, 0.5
  %v720 = vmul.f32 %v594, 0.5
  %v721 = vmul.f32 %v599, 0.5
  %v722 = vmul.f32 %v604, 0.5
  %v723 = vmul.f32 %v609, 0.5
  %v724 = vmul.f32 %v614, 0.5
  %v725 = vmul.f32 %v619, 0.5
  %v726 = vmul.f32 %v624, 0.5
  %v727 = vmul.f32 %v629, 0.5
  %v728 = vmul.f32 %v634, 0.5
  %v729 = vmul.f32 %v639, 0.5
  %v730 = vmul.f32 %v644, 0.5
  %v731 = vmul.f32 %v649, 0.5
  %v732 = vmul.f32 %v654, 0.5
  %v733 = vmul.f32 %v659, 0.5
  %v734 = vmul.f32 %v664, 0.5
  %v735 = vmul.f32 %v669, 0.5
  %v736 = vtanh.pop %v672
  %v737 = vtanh.pop %v673
  %v738 = vtanh.pop %v674
  %v739 = vtanh.pop %v675
  %v740 = vtanh.pop %v676
  %v741 = vtanh.pop %v677
  %v742 = vtanh.pop %v678
  %v743 = vtanh.pop %v679
  %v744 = vtanh.pop %v680
  %v745 = vtanh.pop %v681
  %v746 = vtanh.pop %v682
  %v747 = vtanh.pop %v683
  %v748 = vtanh.pop %v684
  %v749 = vtanh.pop %v685
  %v750 = vtanh.pop %v686
  %v751 = vtanh.pop %v687
  %v752 = vtanh.pop %v688
  %v753 = vtanh.pop %v689
  %v754 = vtanh.pop %v690
  %v755 = vtanh.pop %v691
  %v756 = vtanh.pop %v692
  %v757 = vtanh.pop %v693
  %v758 = vtanh.pop %v694
  %v759 = vtanh.pop %v695
  %v760 = vtanh.pop %v696
  %v761 = vtanh.pop %v697
  %v762 = vtanh.pop %v698
  %v763 = vtanh.pop %v699
  %v764 = vtanh.pop %v700
  %v765 = vtanh.pop %v701
  %v766 = vtanh.pop %v702
  %v767 = vtanh.pop %v703
  %v768 = vtanh.pop %v704
  %v769 = vtanh.pop %v705
  %v770 = vtanh.pop %v706
  %v771 = vtanh.pop %v707
  %v772 = vtanh.pop %v708
  %v773 = vtanh.pop %v709
  %v774 = vtanh.pop %v710
  %v775 = vtanh.pop %v711
  %v776 = vtanh.pop %v712
  %v777 = vtanh.pop %v713
  %v778 = vtanh.pop %v714
  %v779 = vtanh.pop %v715
  %v780 = vtanh.pop %v716
  %v781 = vtanh.pop %v717
  %v782 = vtanh.pop %v718
  %v783 = vtanh.pop %v719
  %v784 = vtanh.pop %v720
  %v785 = vtanh.pop %v721
  %v786 = vtanh.pop %v722
  %v787 = vtanh.pop %v723
  %v788 = vtanh.pop %v724
  %v789 = vtanh.pop %v725
  %v790 = vtanh.pop %v726
  %v791 = vtanh.pop %v727
  %v792 = vtanh.pop %v728
  %v793 = vtanh.pop %v729
  %v794 = vtanh.pop %v730
  %v795 = vtanh.pop %v731
  %v796 = vtanh.pop %v732
  %v797 = vtanh.pop %v733
  %v798 = vtanh.pop %v734
  %v799 = vtanh.pop %v735
  %v800 = vmul.f32 %v736, 0.5
  %v801 = vmul.f32 %v737, 0.5
  %v802 = vmul.f32 %v738, 0.5
  %v803 = vmul.f32 %v739, 0.5
  %v804 = vmul.f32 %v740, 0.5
  %v805 = vmul.f32 %v741, 0.5
  %v806 = vmul.f32 %v742, 0.5
  %v807 = vmul.f32 %v743, 0.5
  %v808 = vmul.f32 %v744, 0.5
  %v809 = vmul.f32 %v745, 0.5
  %v810 = vmul.f32 %v746, 0.5
  %v811 = vmul.f32 %v747, 0.5
  %v812 = vmul.f32 %v748, 0.5
  %v813 = vmul.f32 %v749, 0.5
  %v814 = vmul.f32 %v750, 0.5
  %v815 = vmul.f32 %v751, 0.5
  %v816 = vmul.f32 %v752, 0.5
  %v817 = vmul.f32 %v753, 0.5
  %v818 = vmul.f32 %v754, 0.5
  %v819 = vmul.f32 %v755, 0.5
  %v820 = vmul.f32 %v756, 0.5
  %v821 = vmul.f32 %v757, 0.5
  %v822 = vmul.f32 %v758, 0.5
  %v823 = vmul.f32 %v759, 0.5
  %v824 = vmul.f32 %v760, 0.5
  %v825 = vmul.f32 %v761, 0.5
  %v826 = vmul.f32 %v762, 0.5
  %v827 = vmul.f32 %v763, 0.5
  %v828 = vmul.f32 %v764, 0.5
  %v829 = vmul.f32 %v765, 0.5
  %v830 = vmul.f32 %v766, 0.5
  %v831 = vmul.f32 %v767, 0.5
  %v832 = vmul.f32 %v768, 0.5
  %v833 = vmul.f32 %v769, 0.5
  %v834 = vmul.f32 %v770, 0.5
  %v835 = vmul.f32 %v771, 0.5
  %v836 = vmul.f32 %v772, 0.5
  %v837 = vmul.f32 %v773, 0.5
  %v838 = vmul.f32 %v774, 0.5
  %v839 = vmul.f32 %v775, 0.5
  %v840 = vmul.f32 %v776, 0.5
  %v841 = vmul.f32 %v777, 0.5
  %v842 = vmul.f32 %v778, 0.5
  %v843 = vmul.f32 %v779, 0.5
  %v844 = vmul.f32 %v780, 0.5
  %v845 = vmul.f32 %v781, 0.5
  %v846 = vmul.f32 %v782, 0.5
  %v847 = vmul.f32 %v783, 0.5
  %v848 = vmul.f32 %v784, 0.5
  %v849 = vmul.f32 %v785, 0.5
  %v850 = vmul.f32 %v786, 0.5
  %v851 = vmul.f32 %v787, 0.5
  %v852 = vmul.f32 %v788, 0.5
  %v853 = vmul.f32 %v789, 0.5
  %v854 = vmul.f32 %v790, 0.5
  %v855 = vmul.f32 %v791, 0.5
  %v856 = vmul.f32 %v792, 0.5
  %v857 = vmul.f32 %v793, 0.5
  %v858 = vmul.f32 %v794, 0.5
  %v859 = vmul.f32 %v795, 0.5
  %v860 = vmul.f32 %v796, 0.5
  %v861 = vmul.f32 %v797, 0.5
  %v862 = vmul.f32 %v798, 0.5
  %v863 = vmul.f32 %v799, 0.5
  %v864 = vadd.f32 %v800, 0.5
  %v865 = vadd.f32 %v801, 0.5
  %v866 = vadd.f32 %v802, 0.5
  %v867 = vadd.f32 %v803, 0.5
  %v868 = vadd.f32 %v804, 0.5
  %v869 = vadd.f32 %v805, 0.5
  %v870 = vadd.f32 %v806, 0.5
  %v871 = vadd.f32 %v807, 0.5
  %v872 = vadd.f32 %v808, 0.5
  %v873 = vadd.f32 %v809, 0.5
  %v874 = vadd.f32 %v810, 0.5
  %v875 = vadd.f32 %v811, 0.5
  %v876 = vadd.f32 %v812, 0.5
  %v877 = vadd.f32 %v813, 0.5
  %v878 = vadd.f32 %v814, 0.5
  %v879 = vadd.f32 %v815, 0.5
  %v880 = vadd.f32 %v816, 0.5
  %v881 = vadd.f32 %v817, 0.5
  %v882 = vadd.f32 %v818, 0.5
  %v883 = vadd.f32 %v819, 0.5
  %v884 = vadd.f32 %v820, 0.5
  %v885 = vadd.f32 %v821, 0.5
  %v886 = vadd.f32 %v822, 0.5
  %v887 = vadd.f32 %v823, 0.5
  %v888 = vadd.f32 %v824, 0.5
  %v889 = vadd.f32 %v825, 0.5
  %v890 = vadd.f32 %v826, 0.5
  %v891 = vadd.f32 %v827, 0.5
  %v892 = vadd.f32 %v828, 0.5
  %v893 = vadd.f32 %v829, 0.5
  %v894 = vadd.f32 %v830, 0.5
  %v895 = vadd.f32 %v831, 0.5
  %v896 = vadd.f32 %v832, 0.5
  %v897 = vadd.f32 %v833, 0.5
  %v898 = vadd.f32 %v834, 0.5
  %v899 = vadd.f32 %v835, 0.5
  %v900 = vadd.f32 %v836, 0.5
  %v901 = vadd.f32 %v837, 0.5
  %v902 = vadd.f32 %v838, 0.5
  %v903 = vadd.f32 %v839, 0.5
  %v904 = vadd.f32 %v840, 0.5
  %v905 = vadd.f32 %v841, 0.5
  %v906 = vadd.f32 %v842, 0.5
  %v907 = vadd.f32 %v843, 0.5
  %v908 = vadd.f32 %v844, 0.5
  %v909 = vadd.f32 %v845, 0.5
  %v910 = vadd.f32 %v846, 0.5
  %v911 = vadd.f32 %v847, 0.5
  %v912 = vadd.f32 %v848, 0.5
  %v913 = vadd.f32 %v849, 0.5
  %v914 = vadd.f32 %v850, 0.5
  %v915 = vadd.f32 %v851, 0.5
  %v916 = vadd.f32 %v852, 0.5
  %v917 = vadd.f32 %v853, 0.5
  %v918 = vadd.f32 %v854, 0.5
  %v919 = vadd.f32 %v855, 0.5
  %v920 = vadd.f32 %v856, 0.5
  %v921 = vadd.f32 %v857, 0.5
  %v922 = vadd.f32 %v858, 0.5
  %v923 = vadd.f32 %v859, 0.5
  %v924 = vadd.f32 %v860, 0.5
  %v925 = vadd.f32 %v861, 0.5
  %v926 = vadd.f32 %v862, 0.5
  %v927 = vadd.f32 %v863, 0.5
  %vm928 = vcmask 64512
  %929 = vst.msk [vmem:[%s3] sm:$0xff] %vm928, %v864
  %930 = vst.msk [vmem:[%s3 + $0x8] sm:$0xff] %vm928, %v865
  %931 = vst.msk [vmem:[%s3 + $0x10] sm:$0xff] %vm928, %v866
  %932 = vst.msk [vmem:[%s3 + $0x18] sm:$0xff] %vm928, %v867
  %933 = vst.msk [vmem:[%s3 + $0x20] sm:$0xff] %vm928, %v868
  %934 = vst.msk [vmem:[%s3 + $0x28] sm:$0xff] %vm928, %v869
  %935 = vst.msk [vmem:[%s3 + $0x30] sm:$0xff] %vm928, %v870
  %936 = vst.msk [vmem:[%s3 + $0x38] sm:$0xff] %vm928, %v871
  %937 = vst.msk [vmem:[%s3 + $0x40] sm:$0xff] %vm928, %v872
  %938 = vst.msk [vmem:[%s3 + $0x48] sm:$0xff] %vm928, %v873
  %939 = vst.msk [vmem:[%s3 + $0x50] sm:$0xff] %vm928, %v874
  %940 = vst.msk [vmem:[%s3 + $0x58] sm:$0xff] %vm928, %v875
  %941 = vst.msk [vmem:[%s3 + $0x60] sm:$0xff] %vm928, %v876
  %942 = vst.msk [vmem:[%s3 + $0x68] sm:$0xff] %vm928, %v877
  %943 = vst.msk [vmem:[%s3 + $0x70] sm:$0xff] %vm928, %v878
  %944 = vst.msk [vmem:[%s3 + $0x78] sm:$0xff] %vm928, %v879
  %945 = vst.msk [vmem:[%s3 + $0x80] sm:$0xff] %vm928, %v880
  %946 = vst.msk [vmem:[%s3 + $0x88] sm:$0xff] %vm928, %v881
  %947 = vst.msk [vmem:[%s3 + $0x90] sm:$0xff] %vm928, %v882
  %948 = vst.msk [vmem:[%s3 + $0x98] sm:$0xff] %vm928, %v883
  %949 = vst.msk [vmem:[%s3 + $0xa0] sm:$0xff] %vm928, %v884
  %950 = vst.msk [vmem:[%s3 + $0xa8] sm:$0xff] %vm928, %v885
  %951 = vst.msk [vmem:[%s3 + $0xb0] sm:$0xff] %vm928, %v886
  %952 = vst.msk [vmem:[%s3 + $0xb8] sm:$0xff] %vm928, %v887
  %953 = vst.msk [vmem:[%s3 + $0xc0] sm:$0xff] %vm928, %v888
  %954 = vst.msk [vmem:[%s3 + $0xc8] sm:$0xff] %vm928, %v889
  %955 = vst.msk [vmem:[%s3 + $0xd0] sm:$0xff] %vm928, %v890
  %956 = vst.msk [vmem:[%s3 + $0xd8] sm:$0xff] %vm928, %v891
  %957 = vst.msk [vmem:[%s3 + $0xe0] sm:$0xff] %vm928, %v892
  %958 = vst.msk [vmem:[%s3 + $0xe8] sm:$0xff] %vm928, %v893
  %959 = vst.msk [vmem:[%s3 + $0xf0] sm:$0xff] %vm928, %v894
  %960 = vst.msk [vmem:[%s3 + $0xf8] sm:$0xff] %vm928, %v895
  %961 = vst.msk [vmem:[%s3 + $0x100] sm:$0xff] %vm928, %v896
  %962 = vst.msk [vmem:[%s3 + $0x108] sm:$0xff] %vm928, %v897
  %963 = vst.msk [vmem:[%s3 + $0x110] sm:$0xff] %vm928, %v898
  %964 = vst.msk [vmem:[%s3 + $0x118] sm:$0xff] %vm928, %v899
  %965 = vst.msk [vmem:[%s3 + $0x120] sm:$0xff] %vm928, %v900
  %966 = vst.msk [vmem:[%s3 + $0x128] sm:$0xff] %vm928, %v901
  %967 = vst.msk [vmem:[%s3 + $0x130] sm:$0xff] %vm928, %v902
  %968 = vst.msk [vmem:[%s3 + $0x138] sm:$0xff] %vm928, %v903
  %969 = vst.msk [vmem:[%s3 + $0x140] sm:$0xff] %vm928, %v904
  %970 = vst.msk [vmem:[%s3 + $0x148] sm:$0xff] %vm928, %v905
  %971 = vst.msk [vmem:[%s3 + $0x150] sm:$0xff] %vm928, %v906
  %972 = vst.msk [vmem:[%s3 + $0x158] sm:$0xff] %vm928, %v907
  %973 = vst.msk [vmem:[%s3 + $0x160] sm:$0xff] %vm928, %v908
  %974 = vst.msk [vmem:[%s3 + $0x168] sm:$0xff] %vm928, %v909
  %975 = vst.msk [vmem:[%s3 + $0x170] sm:$0xff] %vm928, %v910
  %976 = vst.msk [vmem:[%s3 + $0x178] sm:$0xff] %vm928, %v911
  %977 = vst.msk [vmem:[%s3 + $0x180] sm:$0xff] %vm928, %v912
  %978 = vst.msk [vmem:[%s3 + $0x188] sm:$0xff] %vm928, %v913
  %979 = vst.msk [vmem:[%s3 + $0x190] sm:$0xff] %vm928, %v914
  %980 = vst.msk [vmem:[%s3 + $0x198] sm:$0xff] %vm928, %v915
  %981 = vst.msk [vmem:[%s3 + $0x1a0] sm:$0xff] %vm928, %v916
  %982 = vst.msk [vmem:[%s3 + $0x1a8] sm:$0xff] %vm928, %v917
  %983 = vst.msk [vmem:[%s3 + $0x1b0] sm:$0xff] %vm928, %v918
  %984 = vst.msk [vmem:[%s3 + $0x1b8] sm:$0xff] %vm928, %v919
  %985 = vst.msk [vmem:[%s3 + $0x1c0] sm:$0xff] %vm928, %v920
  %986 = vst.msk [vmem:[%s3 + $0x1c8] sm:$0xff] %vm928, %v921
  %987 = vst.msk [vmem:[%s3 + $0x1d0] sm:$0xff] %vm928, %v922
  %988 = vst.msk [vmem:[%s3 + $0x1d8] sm:$0xff] %vm928, %v923
  %989 = vst.msk [vmem:[%s3 + $0x1e0] sm:$0xff] %vm928, %v924
  %990 = vst.msk [vmem:[%s3 + $0x1e8] sm:$0xff] %vm928, %v925
  %991 = vst.msk [vmem:[%s3 + $0x1f0] sm:$0xff] %vm928, %v926
  %992 = vst.msk [vmem:[%s3 + $0x1f8] sm:$0xff] %vm928, %v927
  // Predicated region
  $region14: #{tpu_custom_call.1} parent=0 // pred_check
    _
  $region15: #{tpu_custom_call.1} parent=0 // pred_check_branch
    %994 = sbr.rel (0) target = $region17
  $region16: #{tpu_custom_call.1} parent=0 // pred_region
    _
  $region17: #{tpu_custom_call.1} parent=0 // pred_fallthru
    _
  // Predicated region
  $region18: #{tpu_custom_call.1} parent=0 // pred_check
    _
  $region19: #{tpu_custom_call.1} parent=0 // pred_check_branch
    %996 = sbr.rel (0) target = $region21
  $region20: #{tpu_custom_call.1} parent=0 // pred_region
    _
  $region21: #{tpu_custom_call.1} parent=0 // pred_fallthru
    _

</llo_original>
